<compile_context>
chip_gen: v7x
topology: tpu7x:2x2x1
jax: 0.10.0
libtpu: 0.0.40
codegen_flags: <defaults>
</compile_context>

<pallas_src>
import jax
import jax.numpy as jnp
from jax.experimental import pallas as pl
from jax.experimental.pallas import tpu as pltpu


def _subspace_kernel(t_ref, mean_ref, cov_ref, out_ref):
    """out = mean + sum_r t[r] * cov[r, :] for one D-tile (VPU/XLU only).

    t_ref:    (rank, 1)   VMEM, f32
    mean_ref: (1, TD)     VMEM tile of mean
    cov_ref:  (rank, TD)  VMEM tile of cov_factor
    out_ref:  (1, TD)     VMEM tile of the output
    """
    t_col = t_ref[...]                                   # (rank, 1) f32
    cov = cov_ref[...].astype(jnp.float32)               # (rank, TD)
    # Dense multiply + sublane-axis reduce over the *logical* rank rows only
    # (safe even when rank % 8 != 0: the reduce is over the logical shape, so
    # sublane padding cannot leak into the sum).
    proj = jnp.sum(cov * t_col, axis=0, keepdims=True)   # (1, TD) f32
    out_ref[...] = (mean_ref[...].astype(jnp.float32) + proj).astype(out_ref.dtype)


def _cost_estimate(rank, D, t_dtype, mean_dtype, cov_dtype, out_dtype):
    bytes_accessed = (
        rank * jnp.dtype(t_dtype).itemsize
        + D * jnp.dtype(mean_dtype).itemsize
        + rank * D * jnp.dtype(cov_dtype).itemsize
        + D * jnp.dtype(out_dtype).itemsize
    )
    return pl.CostEstimate(
        flops=2 * rank * D, transcendentals=0, bytes_accessed=bytes_accessed
    )


def _auto_tile_d(D, rank, itemsize, vmem_budget_bytes):
    """Lane-dense D-tile: fits double-buffered VMEM, keeps >= 8 grid steps."""
    # Double-buffered cov + mean + out per lane (t is negligible).
    per_lane_bytes = 2 * (rank + 2) * itemsize
    max_tile = max(128, min(8192, vmem_budget_bytes // per_lane_bytes))
    max_tile = (max_tile // 128) * 128
    # Target at least 8 steps (>= 4 per TensorCore on v7x), even step count
    # when possible; per-step overhead (~0.35us) makes extra steps ~free.
    target_steps = max(8, pl.cdiv(D, max_tile))
    if target_steps % 2:
        target_steps += 1
    tile = pl.cdiv(D, target_steps)
    tile = max(128, pl.cdiv(tile, 128) * 128)
    return int(min(tile, max_tile))


def subspace_forward(t, mean, cov_factor, *, tile_d=None,
                     vmem_budget_bytes=16 * 1024 * 1024):
    """out = mean + cov_factor.T @ t computed with a Pallas TPU kernel.

    Args:
      t:          (rank,)
      mean:       (D,)
      cov_factor: (rank, D)      (f32 or bf16; accumulation is f32)
      tile_d:     optional explicit D-tile (multiple of 128); None = auto.
    Returns:
      (D,) array in the promoted dtype of the inputs.
    """
    rank, D = cov_factor.shape
    assert mean.shape == (D,), (mean.shape, D)
    assert t.shape == (rank,), (t.shape, rank)

    out_dtype = jnp.result_type(t.dtype, mean.dtype, cov_factor.dtype)
    mean2d = mean.reshape(1, D)
    t_col = t.reshape(rank, 1).astype(jnp.float32)   # broadcast column for the reduce
    cost = _cost_estimate(rank, D, t_col.dtype, mean.dtype, cov_factor.dtype,
                          out_dtype)

    total_bytes = (
        D * jnp.dtype(mean.dtype).itemsize
        + rank * D * jnp.dtype(cov_factor.dtype).itemsize
        + D * jnp.dtype(out_dtype).itemsize
    )

    # ---- Small-D path: whole problem in VMEM, single invocation, no grid.
    # Threshold kept low (~256 KiB) so anything with >= a few tiles of work
    # goes through the pipelined / megacore-parallel tiled path instead.
    if tile_d is None and total_bytes <= 256 * 1024:
        out2d = pl.pallas_call(
            _subspace_kernel,
            out_shape=jax.ShapeDtypeStruct((1, D), out_dtype),
            in_specs=[
                pl.BlockSpec(memory_space=pltpu.MemorySpace.VMEM),  # t (rank,1)
                pl.BlockSpec(memory_space=pltpu.MemorySpace.VMEM),  # mean
                pl.BlockSpec(memory_space=pltpu.MemorySpace.VMEM),  # cov
            ],
            out_specs=pl.BlockSpec(memory_space=pltpu.MemorySpace.VMEM),
            cost_estimate=cost,
            compiler_params=pltpu.CompilerParams(
                vmem_limit_bytes=32 * 1024 * 1024),
        )(t_col, mean2d, cov_factor)
        return out2d.reshape(D)

    # ---- Tiled path: 1-D grid over D with lane-dense tiles.
    if tile_d is None:
        itemsize = max(jnp.dtype(cov_factor.dtype).itemsize,
                       jnp.dtype(out_dtype).itemsize)
        tile_d = _auto_tile_d(D, rank, itemsize, vmem_budget_bytes)
    assert tile_d % 128 == 0, "tile_d must be a multiple of 128 (lane width)"

    grid = (pl.cdiv(D, tile_d),)  # ragged last tile handled by Pallas masking

    out2d = pl.pallas_call(
        _subspace_kernel,
        out_shape=jax.ShapeDtypeStruct((1, D), out_dtype),
        grid_spec=pltpu.PrefetchScalarGridSpec(
            num_scalar_prefetch=0,
            grid=grid,
            in_specs=[
                # t column: same (rank, 1) block every step -> stays resident
                pl.BlockSpec((rank, 1), lambda i: (0, 0)),
                # mean tile along D
                pl.BlockSpec((1, tile_d), lambda i: (0, i)),
                # cov_factor tile along D
                pl.BlockSpec((rank, tile_d), lambda i: (0, i)),
            ],
            out_specs=pl.BlockSpec((1, tile_d), lambda i: (0, i)),
        ),
        cost_estimate=cost,
        compiler_params=pltpu.CompilerParams(
            dimension_semantics=("parallel",),
            vmem_limit_bytes=32 * 1024 * 1024,   # safe on v7x's 64 MiB VMEM
        ),
    )(t_col, mean2d, cov_factor)
    return out2d.reshape(D)


if __name__ == "__main__":
    # Deterministic synthetic "buffers" (as SubspaceModel.__init__ would hold).
    key = jax.random.PRNGKey(0)
    k_mean, k_cov, k_t, k_rest = jax.random.split(key, 4)

    # Small case: exercises the single-block (no-grid) path.
    rank, D = 8, 1024
    mean = jax.random.normal(k_mean, (D,), dtype=jnp.float32)
    cov_factor = jax.random.normal(k_cov, (rank, D), dtype=jnp.float32)
    t = jax.random.normal(k_t, (rank,), dtype=jnp.float32)

    out = jax.block_until_ready(subspace_forward(t, mean, cov_factor))
    ref = mean + cov_factor.T @ t
    assert out.shape == (D,)
    assert jnp.allclose(out, ref, atol=1e-5, rtol=1e-5), "small-path mismatch"

    # Ragged D with explicit tile: exercises the tiled grid path + masked
    # last tile (4000 is deliberately NOT a multiple of 128 or 512).
    rank2, D2 = 8, 4000
    k_mean2, k_cov2, k_t2 = jax.random.split(k_rest, 3)
    mean2 = jax.random.normal(k_mean2, (D2,), dtype=jnp.float32)
    cov2 = jax.random.normal(k_cov2, (rank2, D2), dtype=jnp.float32)
    t2 = jax.random.normal(k_t2, (rank2,), dtype=jnp.float32)

    out2 = jax.block_until_ready(subspace_forward(t2, mean2, cov2, tile_d=512))
    ref2 = mean2 + cov2.T @ t2
    assert out2.shape == (D2,)
    assert jnp.allclose(out2, ref2, atol=1e-5, rtol=1e-5), "tiled-path mismatch"

    print("KERNEL_OK")
</pallas_src>

<mosaic_0001>
module attributes {stable_mosaic.version = 11 : i64} {
  func.func @_subspace_kernel(%arg0: memref<8x1xf32, #tpu.memory_space<vmem>>, %arg1: memref<1x1024xf32, #tpu.memory_space<vmem>>, %arg2: memref<8x1024xf32, #tpu.memory_space<vmem>>, %arg3: memref<1x1024xf32, #tpu.memory_space<vmem>>) attributes {dimension_semantics = [], scalar_prefetch = 0 : i64, scratch_operands = 0 : i64, tpu.core_type = #tpu.core_type<tc>} {
    %c0 = arith.constant 0 : index
    %c0_0 = arith.constant 0 : index
    %0 = vector.load %arg0[%c0, %c0_0] : memref<8x1xf32, #tpu.memory_space<vmem>>, vector<8x1xf32>
    %c0_1 = arith.constant 0 : index
    %c0_2 = arith.constant 0 : index
    %1 = vector.load %arg2[%c0_1, %c0_2] : memref<8x1024xf32, #tpu.memory_space<vmem>>, vector<8x1024xf32>
    %2 = vector.broadcast %0 : vector<8x1xf32> to vector<8x1024xf32>
    %3 = arith.mulf %1, %2 : vector<8x1024xf32>
    %cst = arith.constant dense<0.000000e+00> : vector<1024xf32>
    %4 = vector.multi_reduction <add>, %3, %cst [0] : vector<8x1024xf32> to vector<1024xf32>
    %5 = vector.shape_cast %4 : vector<1024xf32> to vector<1x1024xf32>
    %c0_3 = arith.constant 0 : index
    %c0_4 = arith.constant 0 : index
    %6 = vector.load %arg1[%c0_3, %c0_4] : memref<1x1024xf32, #tpu.memory_space<vmem>>, vector<1x1024xf32>
    %7 = arith.addf %6, %5 : vector<1x1024xf32>
    %c0_5 = arith.constant 0 : index
    %c0_6 = arith.constant 0 : index
    %8 = vector.load %arg3[%c0_5, %c0_6] : memref<1x1024xf32, #tpu.memory_space<vmem>>, vector<1x1024xf32>
    tpu.vector_store %arg3[%c0_5, %c0_6], %7 {strides = array<i32>} : memref<1x1024xf32, #tpu.memory_space<vmem>>, vector<1x1024xf32>,
    return
  }
}

</mosaic_0001>

<llo_original>
// kernel: tpu_custom_call.1
$region0: #{tpu_custom_call.1}
  #allocation0 [shape = 'u32[]', space=smem, size = 0x4, offset = 0x4, fixed_abs, tag = 'smem constant byte address 0x4 - core index']
  #allocation1 [shape = 'u32[144,128]{1,0:T(1,128)}', space=vmem, size = 0x12000, scoped, tag = 'internal scratch']
  %s0 = inlined_call_operand.vmem [shape: f32[8,1], index: 0, kind: input, shape index: {}]
  %s1 = inlined_call_operand.vmem [shape: f32[1,1024], index: 1, kind: input, shape index: {}]
  %s2 = inlined_call_operand.hbm [shape: f32[8,1024], index: 2, kind: input, shape index: {}]
  %s3 = inlined_call_operand.hbm [shape: f32[1,1024], index: 3, kind: output, shape index: {}]
  %s4 = sld [smem:[#allocation0]]
  $region26: #{tpu_custom_call.1} parent=0
    _
  %s6 = ssub.s32 1, %s4
  %s7 = scalar_select 0, %s6, %s4
  $region1: #{tpu_custom_call.1} parent=0
    #allocation2 [shape = 'u8[32768]{0}', space=vmem, size = 0x8000, scoped, tag = 'input window, operand 2, single buffered']
    #allocation3 [shape = 's32[1]{0}', space=sflag, size = 0x4, scoped, tag = 'scoped memory for tpu_custom_call.1']
    #allocation4 [shape = 's32[1]{0}', space=sflag, size = 0x4, scoped, tag = 'scoped memory for tpu_custom_call.1']
    #allocation5 [shape = 'u8[4096]{0}', space=vmem, size = 0x1000, scoped, tag = 'output window, operand 0, single buffered']
    %8 = vsyncpa [#allocation3], 0
    %9 = vsyncpa [#allocation4], 0
    // Predicated region
    $region2: #{tpu_custom_call.1} parent=1 // pred_check
      _
    $region3: #{tpu_custom_call.1} parent=1 // pred_check_branch
      %11 = sbr.rel (0) target = $region5
    $region4: #{tpu_custom_call.1} parent=1 // pred_region
      _
    $region5: #{tpu_custom_call.1} parent=1 // pred_fallthru
      _
    // Predicated region
    $region6: #{tpu_custom_call.1} parent=1 // pred_check
      _
    $region7: #{tpu_custom_call.1} parent=1 // pred_check_branch
      %13 = sbr.rel (0) target = $region9
    $region8: #{tpu_custom_call.1} parent=1 // pred_region
      _
    $region9: #{tpu_custom_call.1} parent=1 // pred_fallthru
      _
    // Predicated region
    $region10: #{tpu_custom_call.1} parent=1 // pred_check
      _
    $region11: #{tpu_custom_call.1} parent=1 // pred_check_branch
      %15 = sbr.rel (0) target = $region13
    $region12: #{tpu_custom_call.1} parent=1 // pred_region
      %s17 = ssub.s32 1024, 1024
      %18 = vsyncadd [#allocation3], %s17
      %s20 = sshll.u32 [#allocation2], 4
      %s21 = int_to_ptr.vmem [resolvable:$true] %s20
      %23 = dma.hbm_to_vmem [thread:$0]  %s2, 1024, %s21, [#allocation3]
    $region13: #{tpu_custom_call.1} parent=1 // pred_fallthru
      _
    // Predicated region
    $region14: #{tpu_custom_call.1} parent=1 // pred_check
      _
    $region15: #{tpu_custom_call.1} parent=1 // pred_check_branch
      %25 = sbr.rel (0) target = $region17
    $region16: #{tpu_custom_call.1} parent=1 // pred_region
      %26 = dma.done [#allocation3], 1024
    $region17: #{tpu_custom_call.1} parent=1 // pred_fallthru
      _
    %v27 = vld [vmem:[%s0] sm:$0xff]
    %v28 = vld [vmem:[#allocation2] sm:$0xff]
    %v29 = vld [vmem:[#allocation2 + $0x8] sm:$0xff]
    %v30 = vld [vmem:[#allocation2 + $0x10] sm:$0xff]
    %v31 = vld [vmem:[#allocation2 + $0x18] sm:$0xff]
    %v32 = vld [vmem:[#allocation2 + $0x20] sm:$0xff]
    %v33 = vld [vmem:[#allocation2 + $0x28] sm:$0xff]
    %v34 = vld [vmem:[#allocation2 + $0x30] sm:$0xff]
    %v35 = vld [vmem:[#allocation2 + $0x38] sm:$0xff]
    %37 = vset.pattern.permute.xlu0 0
    %38 = vperm.xlu0 %37, %v27
    %v39 = vpop.permute.xlu0 %38
    %v41 = vmul.f32 %v28, %v39
    %v42 = vmul.f32 %v29, %v39
    %v43 = vmul.f32 %v30, %v39
    %v44 = vmul.f32 %v31, %v39
    %v45 = vmul.f32 %v32, %v39
    %v46 = vmul.f32 %v33, %v39
    %v47 = vmul.f32 %v34, %v39
    %v48 = vmul.f32 %v35, %v39
    %v49 = vrot.slane %v41, 4
    %v50 = vadd.f32 %v41, %v49
    %v51 = vrot.slane %v50, 2
    %v52 = vadd.f32 %v50, %v51
    %v53 = vrot.slane %v52, 1
    %v54 = vadd.f32 %v52, %v53
    %v55 = vrot.slane %v42, 4
    %v56 = vadd.f32 %v42, %v55
    %v57 = vrot.slane %v56, 2
    %v58 = vadd.f32 %v56, %v57
    %v59 = vrot.slane %v58, 1
    %v60 = vadd.f32 %v58, %v59
    %v61 = vrot.slane %v43, 4
    %v62 = vadd.f32 %v43, %v61
    %v63 = vrot.slane %v62, 2
    %v64 = vadd.f32 %v62, %v63
    %v65 = vrot.slane %v64, 1
    %v66 = vadd.f32 %v64, %v65
    %v67 = vrot.slane %v44, 4
    %v68 = vadd.f32 %v44, %v67
    %v69 = vrot.slane %v68, 2
    %v70 = vadd.f32 %v68, %v69
    %v71 = vrot.slane %v70, 1
    %v72 = vadd.f32 %v70, %v71
    %v73 = vrot.slane %v45, 4
    %v74 = vadd.f32 %v45, %v73
    %v75 = vrot.slane %v74, 2
    %v76 = vadd.f32 %v74, %v75
    %v77 = vrot.slane %v76, 1
    %v78 = vadd.f32 %v76, %v77
    %v79 = vrot.slane %v46, 4
    %v80 = vadd.f32 %v46, %v79
    %v81 = vrot.slane %v80, 2
    %v82 = vadd.f32 %v80, %v81
    %v83 = vrot.slane %v82, 1
    %v84 = vadd.f32 %v82, %v83
    %v85 = vrot.slane %v47, 4
    %v86 = vadd.f32 %v47, %v85
    %v87 = vrot.slane %v86, 2
    %v88 = vadd.f32 %v86, %v87
    %v89 = vrot.slane %v88, 1
    %v90 = vadd.f32 %v88, %v89
    %v91 = vrot.slane %v48, 4
    %v92 = vadd.f32 %v48, %v91
    %v93 = vrot.slane %v92, 2
    %v94 = vadd.f32 %v92, %v93
    %v95 = vrot.slane %v94, 1
    %v96 = vadd.f32 %v94, %v95
    %v97 = vld [vmem:[%s1] sm:$0xff]
    %v106 = vcombine.low %v54, %v60
    %v107 = vcombine.low %v66, %v72
    %v108 = vcombine.low %v78, %v84
    %v109 = vcombine.low %v90, %v96
    %v111 = vunpack.c.l.s4 1966171168
    %v112 = vunpack.c.0.s8 %v111
    %v113 = vlaneseq
    %v114 = vshrl.u32 %v113, 7
    %v115 = vsub.s32 %v112, %v114
    %v116 = vrot.slane %v106, %v115
    %v118 = vunpack.c.l.s4 1966171168
    %v119 = vunpack.c.0.s8 %v118
    %v120 = vlaneseq
    %v121 = vshrl.u32 %v120, 7
    %v122 = vsub.s32 %v119, %v121
    %v123 = vrot.slane %v107, %v122
    %v125 = vunpack.c.l.s4 1966171168
    %v126 = vunpack.c.0.s8 %v125
    %v127 = vlaneseq
    %v128 = vshrl.u32 %v127, 7
    %v129 = vsub.s32 %v126, %v128
    %v130 = vrot.slane %v108, %v129
    %v132 = vunpack.c.l.s4 1966171168
    %v133 = vunpack.c.0.s8 %v132
    %v134 = vlaneseq
    %v135 = vshrl.u32 %v134, 7
    %v136 = vsub.s32 %v133, %v135
    %v137 = vrot.slane %v109, %v136
    %v138 = vcombine.low %v116, %v123
    %v139 = vcombine.low %v130, %v137
    %v141 = vunpack.c.l.s4 1966171168
    %v142 = vunpack.c.0.s8 %v141
    %v143 = vlaneseq
    %v144 = vshrl.u32 %v143, 7
    %v145 = vsub.s32 %v142, %v144
    %v146 = vrot.slane %v138, %v145
    %v148 = vunpack.c.l.s4 1966171168
    %v149 = vunpack.c.0.s8 %v148
    %v150 = vlaneseq
    %v151 = vshrl.u32 %v150, 7
    %v152 = vsub.s32 %v149, %v151
    %v153 = vrot.slane %v139, %v152
    %v154 = vcombine.low %v146, %v153
    %v156 = vadd.f32 %v97, %v154
    %157 = vst [vmem:[#allocation5] sm:$0xff] %v156
    // Predicated region
    $region18: #{tpu_custom_call.1} parent=1 // pred_check
      _
    $region19: #{tpu_custom_call.1} parent=1 // pred_check_branch
      %159 = sbr.rel (0) target = $region21
    $region20: #{tpu_custom_call.1} parent=1 // pred_region
      %s161 = ssub.s32 128, 128
      %162 = vsyncadd [#allocation4], %s161
      %s164 = sshll.u32 [#allocation5], 4
      %s165 = int_to_ptr.vmem [resolvable:$true] %s164
      %167 = dma.vmem_to_hbm [thread:$0]  %s165, 128, %s3, [#allocation4]
    $region21: #{tpu_custom_call.1} parent=1 // pred_fallthru
      _
    // Predicated region
    $region22: #{tpu_custom_call.1} parent=1 // pred_check
      _
    $region23: #{tpu_custom_call.1} parent=1 // pred_check_branch
      %169 = sbr.rel (0) target = $region25
    $region24: #{tpu_custom_call.1} parent=1 // pred_region
      %170 = dma.done [#allocation4], 128
    $region25: #{tpu_custom_call.1} parent=1 // pred_fallthru
      _
    %171 = vsyncpa [#allocation3], 1
    %172 = vsyncpa [#allocation4], 1

</llo_original>
